<compile_context>
chip_gen: v7x
topology: tpu7x:2x2x1
jax: 0.10.0
libtpu: 0.0.40
codegen_flags: <defaults>
</compile_context>

<pallas_src>
import functools

import jax
import jax.numpy as jnp
import numpy as np
from jax import lax
from jax.experimental import pallas as pl
from jax.experimental.pallas import tpu as pltpu


# -----------------------------------------------------------------------------
# Fused kernel.
#   grid = (2, R, P):  phase (0 = scores+softmax, 1 = weighted sum),
#                      r = row tile within a meta-path, p = meta-path.
#   scores_ref : (1, 128) VMEM scratch; lane p holds meta-path p's score, then
#                (after the in-kernel softmax) its attention weight.
#   acc_ref    : (TN, F_in_pad) f32 VMEM accumulator for the weighted sum.
# -----------------------------------------------------------------------------
def _fused_kernel(x_ref, w_ref, b_ref, q_ref, o_ref, scores_ref, acc_ref, *,
                  n_paths, n_row_tiles, n_true_rows):
    phase = pl.program_id(0)
    r = pl.program_id(1)
    p = pl.program_id(2)
    tn = x_ref.shape[0]

    lane_ids = lax.broadcasted_iota(jnp.int32, (1, 128), 1)
    onehot_p = jnp.where(lane_ids == p, 1.0, 0.0)            # selects lane p

    @pl.when((phase == 0) & (r == 0) & (p == 0))
    def _init_scores():
        scores_ref[...] = jnp.zeros_like(scores_ref)

    # ---- Phase 0: accumulate sum_n( q . tanh(x_p W + b) ) into lane p -------
    @pl.when(phase == 0)
    def _score():
        h = jnp.dot(x_ref[...], w_ref[...], preferred_element_type=jnp.float32)
        h_prime = jnp.tanh(h + b_ref[...])                   # (TN, F_out_pad)
        # Rows >= n_true_rows are zero padding in x, but tanh(0 + b) != 0: mask.
        row_ids = lax.broadcasted_iota(jnp.int32, h_prime.shape, 0) + r * tn
        h_prime = jnp.where(row_ids < n_true_rows, h_prime, 0.0)
        col_sum = jnp.sum(h_prime, axis=0, keepdims=True)    # (1, F_out_pad)
        partial = jnp.sum(col_sum * q_ref[...], axis=1, keepdims=True)  # (1, 1)
        scores_ref[...] += partial * onehot_p

    # ---- In-kernel softmax over meta-paths (last score step) ----------------
    @pl.when((phase == 0) & (r == n_row_tiles - 1) & (p == n_paths - 1))
    def _softmax():
        s = scores_ref[...] * (1.0 / n_true_rows)            # mean over nodes
        valid = lane_ids < n_paths
        s = jnp.where(valid, s, -jnp.inf)
        m = jnp.max(s, axis=1, keepdims=True)                # (1, 1)
        e = jnp.where(valid, jnp.exp(s - m), 0.0)
        scores_ref[...] = e / jnp.sum(e, axis=1, keepdims=True)

    # ---- Phase 1: out[row tile] = sum_p a_p * x_p[row tile] ------------------
    @pl.when((phase == 1) & (p == 0))
    def _init_acc():
        acc_ref[...] = jnp.zeros_like(acc_ref)

    @pl.when(phase == 1)
    def _accumulate():
        a_p = jnp.sum(scores_ref[...] * onehot_p, axis=1, keepdims=True)  # (1, 1)
        acc_ref[...] += a_p * x_ref[...]

    @pl.when((phase == 1) & (p == n_paths - 1))
    def _store():
        o_ref[...] = acc_ref[...].astype(o_ref.dtype)


def _round_up(v, m):
    return (v + m - 1) // m * m


def semantic_attention_forward(x, W, b, q, P, *, row_tile=512):
    """Fused Pallas implementation of SemanticAttentionLayer.forward(input, P)."""
    PN, F_in = x.shape
    assert PN % P == 0, "input rows must be P * N"
    N = PN // P
    F_out = W.shape[1]
    assert P <= 128, "meta-path count must fit the 128-lane score vector"

    f32 = jnp.float32
    F_in_p = _round_up(F_in, 128)                   # lane-dense feature dims
    F_out_p = _round_up(F_out, 128)
    TN = _round_up(min(row_tile, _round_up(N, 8)), 8)
    N_pad = _round_up(N, TN)
    R = N_pad // TN                                 # row tiles per meta-path

    # Zero padding is exact: padded x columns hit zero rows of W, padded h'/q
    # columns are zero, padded rows are masked inside the kernel.
    x_p = jnp.pad(x.astype(f32).reshape(P, N, F_in),
                  ((0, 0), (0, N_pad - N), (0, F_in_p - F_in))
                  ).reshape(P * N_pad, F_in_p)
    W_p = jnp.pad(W.astype(f32), ((0, F_in_p - F_in), (0, F_out_p - F_out)))
    b_p = jnp.pad(b.astype(f32), ((0, 0), (0, F_out_p - F_out)))
    q_p = jnp.pad(q.astype(f32), ((0, 0), (0, F_out_p - F_out)))

    kernel = functools.partial(_fused_kernel, n_paths=P, n_row_tiles=R,
                               n_true_rows=N)

    out_pad = pl.pallas_call(
        kernel,
        out_shape=jax.ShapeDtypeStruct((N_pad, F_in_p), f32),
        grid_spec=pltpu.PrefetchScalarGridSpec(
            num_scalar_prefetch=0,
            grid=(2, R, P),                         # (phase, row tile, meta-path)
            in_specs=[
                pl.BlockSpec((TN, F_in_p), lambda ph, r, p: (p * R + r, 0)),  # x tile
                pl.BlockSpec((F_in_p, F_out_p), lambda ph, r, p: (0, 0)),     # W (resident)
                pl.BlockSpec((1, F_out_p), lambda ph, r, p: (0, 0)),          # b (resident)
                pl.BlockSpec((1, F_out_p), lambda ph, r, p: (0, 0)),          # q (resident)
            ],
            # Output is only produced in phase 1; pinning the block index to 0
            # during phase 0 keeps the visit order monotone (no revisits, no
            # spurious HBM write-back of unwritten blocks).
            out_specs=pl.BlockSpec((TN, F_in_p), lambda ph, r, p: (ph * r, 0)),
            scratch_shapes=[
                pltpu.VMEM((1, 128), f32),          # meta-path scores -> softmax weights
                pltpu.VMEM((TN, F_in_p), f32),      # f32 weighted-sum accumulator
            ],
        ),
        compiler_params=pltpu.CompilerParams(
            dimension_semantics=("arbitrary", "arbitrary", "arbitrary"),
        ),
    )(x_p, W_p, b_p, q_p)

    # Slice away padding; torch does .squeeze() on the (N, in_features) result.
    return jnp.squeeze(out_pad[:N, :F_in])


# -----------------------------------------------------------------------------
# Pure-JAX reference (mirrors the PyTorch forward exactly, minus the print).
# -----------------------------------------------------------------------------
def reference_forward(x, W, b, q, P):
    h = x @ W
    h_prime = jnp.tanh(h + b)
    s = (h_prime @ q.T).reshape(P, -1)
    s = s.mean(axis=1, keepdims=True)
    a = jax.nn.softmax(s, axis=0).reshape(P, 1, 1)
    x_emb = x.reshape(P, s.shape[0] and x.shape[0] // P, -1)
    return jnp.squeeze(jnp.sum(x_emb * a, axis=0))


def xavier_uniform(key, shape, gain):
    # torch.nn.init.xavier_uniform_ for 2-D tensors: fan_in = size(1), fan_out = size(0)
    fan_in, fan_out = shape[1], shape[0]
    bound = gain * np.sqrt(6.0 / (fan_in + fan_out))
    return jax.random.uniform(key, shape, jnp.float32, -bound, bound)


if __name__ == "__main__":
    configs = [
        dict(P=4, N=8, F_in=16, F_out=32),      # toy shapes from the module
        dict(P=3, N=12, F_in=20, F_out=24),     # ragged dims -> padding + row masking
        dict(P=3, N=1100, F_in=40, F_out=72),   # N > row tile -> multi-tile (R > 1)
    ]
    key = jax.random.PRNGKey(0)
    gain = 1.414
    for cfg in configs:
        key, k_w, k_b, k_q, k_x = jax.random.split(key, 5)
        W = xavier_uniform(k_w, (cfg["F_in"], cfg["F_out"]), gain)
        b = xavier_uniform(k_b, (1, cfg["F_out"]), gain)
        q = xavier_uniform(k_q, (1, cfg["F_out"]), gain)
        x = jax.random.normal(k_x, (cfg["P"] * cfg["N"], cfg["F_in"]), dtype=jnp.float32)

        out = jax.block_until_ready(semantic_attention_forward(x, W, b, q, cfg["P"]))
        ref = reference_forward(x, W, b, q, cfg["P"])
        np.testing.assert_allclose(np.asarray(out), np.asarray(ref),
                                   rtol=1e-4, atol=2e-5)

    print("KERNEL_OK")
</pallas_src>

<mosaic_0001>
module attributes {stable_mosaic.version = 11 : i64} {
  func.func @_fused_kernel(%arg0: i32, %arg1: i32, %arg2: i32, %arg3: memref<8x128xf32, #tpu.memory_space<vmem>>, %arg4: memref<128x128xf32, #tpu.memory_space<vmem>>, %arg5: memref<1x128xf32, #tpu.memory_space<vmem>>, %arg6: memref<1x128xf32, #tpu.memory_space<vmem>>, %arg7: memref<8x128xf32, #tpu.memory_space<vmem>>, %arg8: memref<1x128xf32, #tpu.memory_space<vmem>>, %arg9: memref<8x128xf32, #tpu.memory_space<vmem>>) attributes {dimension_semantics = [#tpu.dimension_semantics<arbitrary>, #tpu.dimension_semantics<arbitrary>, #tpu.dimension_semantics<arbitrary>], iteration_bounds = array<i64: 2, 1, 4>, scalar_prefetch = 0 : i64, scratch_operands = 2 : i64, tpu.core_type = #tpu.core_type<tc>, window_params = [{transform_indices = @transform_0, window_bounds = array<i64: 8, 128>}, {pipeline_mode = #tpu.pipeline_mode<synchronous>, transform_indices = @transform_1, window_bounds = array<i64: 128, 128>}, {pipeline_mode = #tpu.pipeline_mode<synchronous>, transform_indices = @transform_2, window_bounds = array<i64: 1, 128>}, {pipeline_mode = #tpu.pipeline_mode<synchronous>, transform_indices = @transform_3, window_bounds = array<i64: 1, 128>}, {transform_indices = @transform_4, window_bounds = array<i64: 8, 128>}]} {
    %0 = tpu.iota {dimensions = array<i32: 1>} : vector<1x128xi32>
    %1 = vector.broadcast %arg2 : i32 to vector<1x128xi32>
    %2 = arith.cmpi eq, %0, %1 : vector<1x128xi32>
    %cst = arith.constant 1.000000e+00 : f32
    %cst_0 = arith.constant 0.000000e+00 : f32
    %3 = vector.broadcast %cst : f32 to vector<1x128xf32>
    %4 = vector.broadcast %cst_0 : f32 to vector<1x128xf32>
    %5 = arith.select %2, %3, %4 : vector<1x128xi1>, vector<1x128xf32>
    %c0_i32 = arith.constant 0 : i32
    %6 = arith.cmpi eq, %arg0, %c0_i32 : i32
    %c0_i32_1 = arith.constant 0 : i32
    %7 = arith.cmpi eq, %arg1, %c0_i32_1 : i32
    %8 = arith.andi %6, %7 : i1
    %c0_i32_2 = arith.constant 0 : i32
    %9 = arith.cmpi eq, %arg2, %c0_i32_2 : i32
    %10 = arith.andi %8, %9 : i1
    %11 = arith.extui %10 : i1 to i32
    %c0_i32_3 = arith.constant 0 : i32
    %12 = arith.cmpi ne, %11, %c0_i32_3 : i32
    scf.if %12 {
      %cst_16 = arith.constant 0.000000e+00 : f32
      %36 = vector.broadcast %cst_16 : f32 to vector<1x128xf32>
      %c0 = arith.constant 0 : index
      %c0_17 = arith.constant 0 : index
      %37 = vector.load %arg8[%c0, %c0_17] : memref<1x128xf32, #tpu.memory_space<vmem>>, vector<1x128xf32>
      tpu.vector_store %arg8[%c0, %c0_17], %36 {strides = array<i32>} : memref<1x128xf32, #tpu.memory_space<vmem>>, vector<1x128xf32>,
    } else {
    }
    %c0_i32_4 = arith.constant 0 : i32
    %13 = arith.cmpi eq, %arg0, %c0_i32_4 : i32
    %14 = arith.extui %13 : i1 to i32
    %c0_i32_5 = arith.constant 0 : i32
    %15 = arith.cmpi ne, %14, %c0_i32_5 : i32
    scf.if %15 {
      %c0 = arith.constant 0 : index
      %c0_16 = arith.constant 0 : index
      %36 = vector.load %arg3[%c0, %c0_16] : memref<8x128xf32, #tpu.memory_space<vmem>>, vector<8x128xf32>
      %c0_17 = arith.constant 0 : index
      %c0_18 = arith.constant 0 : index
      %37 = vector.load %arg4[%c0_17, %c0_18] : memref<128x128xf32, #tpu.memory_space<vmem>>, vector<128x128xf32>
      %cst_19 = arith.constant dense<0.000000e+00> : vector<8x128xf32>
      %38 = tpu.matmul %36, %37, %cst_19 {dimension_numbers = #tpu.dot_dimension_numbers<[1], [0], [0], [1], [0, 0, 1, 1], [], []>} : vector<8x128xf32>, vector<128x128xf32>, vector<8x128xf32> -> vector<8x128xf32>
      %c0_20 = arith.constant 0 : index
      %c0_21 = arith.constant 0 : index
      %39 = vector.load %arg5[%c0_20, %c0_21] : memref<1x128xf32, #tpu.memory_space<vmem>>, vector<1x128xf32>
      %40 = vector.broadcast %39 : vector<1x128xf32> to vector<8x128xf32>
      %41 = arith.addf %38, %40 : vector<8x128xf32>
      %42 = math.tanh %41 : vector<8x128xf32>
      %43 = tpu.iota {dimensions = array<i32: 0>} : vector<8x128xi32>
      %c8_i32 = arith.constant 8 : i32
      %44 = arith.muli %arg1, %c8_i32 : i32
      %45 = vector.broadcast %44 : i32 to vector<8x128xi32>
      %46 = arith.addi %43, %45 : vector<8x128xi32>
      %c8_i32_22 = arith.constant 8 : i32
      %47 = vector.broadcast %c8_i32_22 : i32 to vector<8x128xi32>
      %48 = arith.cmpi slt, %46, %47 : vector<8x128xi32>
      %cst_23 = arith.constant 0.000000e+00 : f32
      %49 = vector.broadcast %cst_23 : f32 to vector<8x128xf32>
      %50 = arith.select %48, %42, %49 : vector<8x128xi1>, vector<8x128xf32>
      %cst_24 = arith.constant dense<0.000000e+00> : vector<128xf32>
      %51 = vector.multi_reduction <add>, %50, %cst_24 [0] : vector<8x128xf32> to vector<128xf32>
      %52 = vector.shape_cast %51 : vector<128xf32> to vector<1x128xf32>
      %c0_25 = arith.constant 0 : index
      %c0_26 = arith.constant 0 : index
      %53 = vector.load %arg6[%c0_25, %c0_26] : memref<1x128xf32, #tpu.memory_space<vmem>>, vector<1x128xf32>
      %54 = arith.mulf %52, %53 : vector<1x128xf32>
      %cst_27 = arith.constant dense<0.000000e+00> : vector<1xf32>
      %55 = vector.multi_reduction <add>, %54, %cst_27 [1] : vector<1x128xf32> to vector<1xf32>
      %56 = vector.shape_cast %55 : vector<1xf32> to vector<1x1xf32>
      %c0_28 = arith.constant 0 : index
      %c0_29 = arith.constant 0 : index
      %57 = vector.load %arg8[%c0_28, %c0_29] : memref<1x128xf32, #tpu.memory_space<vmem>>, vector<1x128xf32>
      %58 = vector.broadcast %56 : vector<1x1xf32> to vector<1x128xf32>
      %59 = arith.mulf %58, %5 : vector<1x128xf32>
      %60 = arith.addf %57, %59 : vector<1x128xf32>
      %c0_30 = arith.constant 0 : index
      %c0_31 = arith.constant 0 : index
      %61 = vector.load %arg8[%c0_30, %c0_31] : memref<1x128xf32, #tpu.memory_space<vmem>>, vector<1x128xf32>
      tpu.vector_store %arg8[%c0_30, %c0_31], %60 {strides = array<i32>} : memref<1x128xf32, #tpu.memory_space<vmem>>, vector<1x128xf32>,
    } else {
    }
    %c0_i32_6 = arith.constant 0 : i32
    %16 = arith.cmpi eq, %arg0, %c0_i32_6 : i32
    %c0_i32_7 = arith.constant 0 : i32
    %17 = arith.cmpi eq, %arg1, %c0_i32_7 : i32
    %18 = arith.andi %16, %17 : i1
    %c3_i32 = arith.constant 3 : i32
    %19 = arith.cmpi eq, %arg2, %c3_i32 : i32
    %20 = arith.andi %18, %19 : i1
    %21 = arith.extui %20 : i1 to i32
    %c0_i32_8 = arith.constant 0 : i32
    %22 = arith.cmpi ne, %21, %c0_i32_8 : i32
    scf.if %22 {
      %c0 = arith.constant 0 : index
      %c0_16 = arith.constant 0 : index
      %36 = vector.load %arg8[%c0, %c0_16] : memref<1x128xf32, #tpu.memory_space<vmem>>, vector<1x128xf32>
      %cst_17 = arith.constant 1.250000e-01 : f32
      %37 = vector.broadcast %cst_17 : f32 to vector<1x128xf32>
      %38 = arith.mulf %36, %37 : vector<1x128xf32>
      %c4_i32 = arith.constant 4 : i32
      %39 = vector.broadcast %c4_i32 : i32 to vector<1x128xi32>
      %40 = arith.cmpi slt, %0, %39 : vector<1x128xi32>
      %cst_18 = arith.constant 0xFF800000 : f32
      %41 = vector.broadcast %cst_18 : f32 to vector<1x128xf32>
      %42 = arith.select %40, %38, %41 : vector<1x128xi1>, vector<1x128xf32>
      %cst_19 = arith.constant dense<0xFF800000> : vector<1xf32>
      %43 = vector.multi_reduction <maximumf>, %42, %cst_19 [1] : vector<1x128xf32> to vector<1xf32>
      %44 = vector.shape_cast %43 : vector<1xf32> to vector<1x1xf32>
      %45 = vector.broadcast %44 : vector<1x1xf32> to vector<1x128xf32>
      %46 = arith.subf %42, %45 : vector<1x128xf32>
      %47 = math.exp %46 : vector<1x128xf32>
      %cst_20 = arith.constant 0.000000e+00 : f32
      %48 = vector.broadcast %cst_20 : f32 to vector<1x128xf32>
      %49 = arith.select %40, %47, %48 : vector<1x128xi1>, vector<1x128xf32>
      %cst_21 = arith.constant dense<0.000000e+00> : vector<1xf32>
      %50 = vector.multi_reduction <add>, %49, %cst_21 [1] : vector<1x128xf32> to vector<1xf32>
      %51 = vector.shape_cast %50 : vector<1xf32> to vector<1x1xf32>
      %52 = vector.broadcast %51 : vector<1x1xf32> to vector<1x128xf32>
      %53 = arith.divf %49, %52 : vector<1x128xf32>
      %c0_22 = arith.constant 0 : index
      %c0_23 = arith.constant 0 : index
      %54 = vector.load %arg8[%c0_22, %c0_23] : memref<1x128xf32, #tpu.memory_space<vmem>>, vector<1x128xf32>
      tpu.vector_store %arg8[%c0_22, %c0_23], %53 {strides = array<i32>} : memref<1x128xf32, #tpu.memory_space<vmem>>, vector<1x128xf32>,
    } else {
    }
    %c1_i32 = arith.constant 1 : i32
    %23 = arith.cmpi eq, %arg0, %c1_i32 : i32
    %c0_i32_9 = arith.constant 0 : i32
    %24 = arith.cmpi eq, %arg2, %c0_i32_9 : i32
    %25 = arith.andi %23, %24 : i1
    %26 = arith.extui %25 : i1 to i32
    %c0_i32_10 = arith.constant 0 : i32
    %27 = arith.cmpi ne, %26, %c0_i32_10 : i32
    scf.if %27 {
      %cst_16 = arith.constant 0.000000e+00 : f32
      %36 = vector.broadcast %cst_16 : f32 to vector<8x128xf32>
      %c0 = arith.constant 0 : index
      %c0_17 = arith.constant 0 : index
      %37 = vector.load %arg9[%c0, %c0_17] : memref<8x128xf32, #tpu.memory_space<vmem>>, vector<8x128xf32>
      tpu.vector_store %arg9[%c0, %c0_17], %36 {strides = array<i32>} : memref<8x128xf32, #tpu.memory_space<vmem>>, vector<8x128xf32>,
    } else {
    }
    %c1_i32_11 = arith.constant 1 : i32
    %28 = arith.cmpi eq, %arg0, %c1_i32_11 : i32
    %29 = arith.extui %28 : i1 to i32
    %c0_i32_12 = arith.constant 0 : i32
    %30 = arith.cmpi ne, %29, %c0_i32_12 : i32
    scf.if %30 {
      %c0 = arith.constant 0 : index
      %c0_16 = arith.constant 0 : index
      %36 = vector.load %arg8[%c0, %c0_16] : memref<1x128xf32, #tpu.memory_space<vmem>>, vector<1x128xf32>
      %37 = arith.mulf %36, %5 : vector<1x128xf32>
      %cst_17 = arith.constant dense<0.000000e+00> : vector<1xf32>
      %38 = vector.multi_reduction <add>, %37, %cst_17 [1] : vector<1x128xf32> to vector<1xf32>
      %39 = vector.shape_cast %38 : vector<1xf32> to vector<1x1xf32>
      %c0_18 = arith.constant 0 : index
      %c0_19 = arith.constant 0 : index
      %40 = vector.load %arg9[%c0_18, %c0_19] : memref<8x128xf32, #tpu.memory_space<vmem>>, vector<8x128xf32>
      %c0_20 = arith.constant 0 : index
      %c0_21 = arith.constant 0 : index
      %41 = vector.load %arg3[%c0_20, %c0_21] : memref<8x128xf32, #tpu.memory_space<vmem>>, vector<8x128xf32>
      %42 = vector.broadcast %39 : vector<1x1xf32> to vector<8x128xf32>
      %43 = arith.mulf %42, %41 : vector<8x128xf32>
      %44 = arith.addf %40, %43 : vector<8x128xf32>
      %c0_22 = arith.constant 0 : index
      %c0_23 = arith.constant 0 : index
      %45 = vector.load %arg9[%c0_22, %c0_23] : memref<8x128xf32, #tpu.memory_space<vmem>>, vector<8x128xf32>
      tpu.vector_store %arg9[%c0_22, %c0_23], %44 {strides = array<i32>} : memref<8x128xf32, #tpu.memory_space<vmem>>, vector<8x128xf32>,
    } else {
    }
    %c1_i32_13 = arith.constant 1 : i32
    %31 = arith.cmpi eq, %arg0, %c1_i32_13 : i32
    %c3_i32_14 = arith.constant 3 : i32
    %32 = arith.cmpi eq, %arg2, %c3_i32_14 : i32
    %33 = arith.andi %31, %32 : i1
    %34 = arith.extui %33 : i1 to i32
    %c0_i32_15 = arith.constant 0 : i32
    %35 = arith.cmpi ne, %34, %c0_i32_15 : i32
    scf.if %35 {
      %c0 = arith.constant 0 : index
      %c0_16 = arith.constant 0 : index
      %36 = vector.load %arg9[%c0, %c0_16] : memref<8x128xf32, #tpu.memory_space<vmem>>, vector<8x128xf32>
      %c0_17 = arith.constant 0 : index
      %c0_18 = arith.constant 0 : index
      %37 = vector.load %arg7[%c0_17, %c0_18] : memref<8x128xf32, #tpu.memory_space<vmem>>, vector<8x128xf32>
      tpu.vector_store %arg7[%c0_17, %c0_18], %36 {strides = array<i32>} : memref<8x128xf32, #tpu.memory_space<vmem>>, vector<8x128xf32>,
    } else {
    }
    return
  }
  func.func @transform_0(%arg0: i32, %arg1: i32, %arg2: i32) -> (i32, i32) {
    %c1_i32 = arith.constant 1 : i32
    %0 = arith.muli %arg2, %c1_i32 : i32
    %1 = arith.addi %0, %arg1 : i32
    %c0_i32 = arith.constant 0 : i32
    %c0_i32_0 = arith.constant 0 : i32
    return %1, %c0_i32 : i32, i32
  }
  func.func @transform_1(%arg0: i32, %arg1: i32, %arg2: i32) -> (i32, i32) {
    %c0_i32 = arith.constant 0 : i32
    %c0_i32_0 = arith.constant 0 : i32
    %c0_i32_1 = arith.constant 0 : i32
    return %c0_i32, %c0_i32_0 : i32, i32
  }
  func.func @transform_2(%arg0: i32, %arg1: i32, %arg2: i32) -> (i32, i32) {
    %c0_i32 = arith.constant 0 : i32
    %c0_i32_0 = arith.constant 0 : i32
    %c0_i32_1 = arith.constant 0 : i32
    return %c0_i32, %c0_i32_0 : i32, i32
  }
  func.func @transform_3(%arg0: i32, %arg1: i32, %arg2: i32) -> (i32, i32) {
    %c0_i32 = arith.constant 0 : i32
    %c0_i32_0 = arith.constant 0 : i32
    %c0_i32_1 = arith.constant 0 : i32
    return %c0_i32, %c0_i32_0 : i32, i32
  }
  func.func @transform_4(%arg0: i32, %arg1: i32, %arg2: i32) -> (i32, i32) {
    %0 = arith.muli %arg0, %arg1 : i32
    %c0_i32 = arith.constant 0 : i32
    %c0_i32_0 = arith.constant 0 : i32
    return %0, %c0_i32 : i32, i32
  }
}

</mosaic_0001>

<llo_original>
// kernel: tpu_custom_call.1
$region0: #{tpu_custom_call.1}
  #allocation0 [shape = 'u32[]', space=smem, size = 0x4, offset = 0x4, fixed_abs, tag = 'smem constant byte address 0x4 - core index']
  #allocation1 [shape = 'u32[144,128]{1,0:T(1,128)}', space=vmem, size = 0x12000, scoped, tag = 'internal scratch']
  #allocation2 [shape = 'f32[1,128]{1,0:T(1,128)}', space=vmem, size = 0x200, scoped, tag = 'scratch operand']
  #allocation3 [shape = 'f32[8,128]{1,0:T(8,128)}', space=vmem, size = 0x1000, scoped, tag = 'scratch operand']
  %s0 = inlined_call_operand.hbm [shape: f32[32,128], index: 0, kind: input, shape index: {}]
  %s1 = inlined_call_operand.hbm [shape: f32[128,128], index: 1, kind: input, shape index: {}]
  %s2 = inlined_call_operand.vmem [shape: f32[1,128], index: 2, kind: input, shape index: {}]
  %s3 = inlined_call_operand.vmem [shape: f32[1,128], index: 3, kind: input, shape index: {}]
  %s4 = inlined_call_operand.hbm [shape: f32[8,128], index: 4, kind: output, shape index: {}]
  %s5 = sld [smem:[#allocation0]]
  $region81: #{tpu_custom_call.1} parent=0
    _
  %s7 = ssub.s32 1, %s5
  %s8 = scalar_select 0, %s7, %s5
  $region1: #{tpu_custom_call.1} parent=0
    #allocation4 [shape = 'u8[8192]{0}', space=vmem, size = 0x2000, scoped, tag = 'input window, operand 0']
    #allocation5 [shape = 's32[2]{0}', space=sflag, size = 0x8, scoped, tag = 'scoped memory for tpu_custom_call.1']
    #allocation6 [shape = 's32[2]{0}', space=sflag, size = 0x8, scoped, tag = 'scoped memory for tpu_custom_call.1']
    #allocation7 [shape = 'u8[65536]{0}', space=vmem, size = 0x10000, scoped, tag = 'input window, operand 1, single buffered']
    #allocation8 [shape = 's32[1]{0}', space=sflag, size = 0x4, scoped, tag = 'scoped memory for tpu_custom_call.1']
    #allocation9 [shape = 'u8[8192]{0}', space=vmem, size = 0x2000, scoped, tag = 'output window, operand 0']
    %9 = vsyncpa [#allocation5], 0
    %s10 = scalar_lea.sflag [#allocation5], 1
    %11 = vsyncpa %s10, 0
    %12 = vsyncpa [#allocation8], 0
    %13 = vsyncpa [#allocation6], 0
    %s14 = scalar_lea.sflag [#allocation6], 1
    %15 = vsyncpa %s14, 0
    loop: start=0, step=1, limit=10
    $region2: #{tpu_custom_call.1} parent=1 // loop_pre_header
      _
    $region3: #{tpu_custom_call.1} parent=1 // loop_header
      %s17 = sphi 0, %s21
      %p18 = scmp.ge.s32.totalorder %s17, 10
      %s24 = sphi 0, %s43
      %s25 = sphi 0, %s39
      %s26 = sphi 0, %s35
      %s27 = sphi 0, %s24
      %s28 = sphi 0, %s25
      %s29 = sphi 0, %s26
      %s30 = sphi 0, %s27
      %s31 = sphi 0, %s28
      %s32 = sphi 0, %s29
      %s48 = sphi 0, %s50
      %s51 = sphi 0, %s48
      %s52 = sphi 0, %s51
      %s68 = sphi 0, %s52
      %s72 = sphi 0, %s72
      %s74 = sphi 0, %s72
      %s75 = sphi 0, %s74
      %s89 = sphi 0, %s75
      %s93 = sphi 0, %s93
      %s95 = sphi 0, %s93
      %s96 = sphi 0, %s95
      %s110 = sphi 0, %s96
      %s114 = sphi 0, %s114
      %s116 = sphi 0, %s114
      %s117 = sphi 0, %s116
      %s131 = sphi 0, %s117
      %s139 = sphi 0, %s141
      %s142 = sphi 0, %s139
      %s143 = sphi 0, %s142
      %s159 = sphi 0, %s143
    $region4: #{tpu_custom_call.1} parent=1 // loop_header_branch
      %20 = sbr.rel (%p18) target = $region8
    $region5: #{tpu_custom_call.1} parent=1 // loop_body
      %s22 = ssub.s32 %s17, 1
      %s23 = ssub.s32 %s17, 2
      %s33 = sadd.s32 1, %s26
      %p34 = scmp.ge.s32.totalorder %s33, 4
      %s35 = scalar_select %p34, 0, %s33
      %s36 = sadd.s32 1, %s25
      %s37 = scalar_select %p34, %s36, %s25
      %p38 = scmp.ge.s32.totalorder %s37, 1
      %s39 = scalar_select %p38, 0, %s37
      %s40 = sadd.s32 1, %s24
      %s41 = scalar_select %p38, %s40, %s24
      %p42 = scmp.ge.s32.totalorder %s41, 2
      %s43 = scalar_select %p42, 0, %s41
      %s44 = sadd.s32 %s26, %s25
      %s45 = sadd.s32 %s35, %s39
      %s46 = ssub.s32 %s44, %s45
      %p47 = scmp.eq.s32.totalorder %s46, 0
      %s49 = sadd.s32 %s48, 1
      %s50 = scalar_select %p47, %s48, %s49
      %p53 = pneg %p47
      %p54 = scmp.eq.s32.totalorder %s17, 7
      %p55 = por %p53, %p54
      %p56 = scmp.ne.s32.totalorder %s48, %s51
      %p57 = scmp.eq.s32.totalorder %s17, 0
      %p58 = por %p56, %p57
      %p59 = scmp.ne.s32.totalorder %s48, %s51
      %p60 = scmp.eq.s32.totalorder %s22, 7
      %p61 = por %p59, %p60
      %p62 = scmp.ne.s32.totalorder %s51, %s52
      %p63 = scmp.eq.s32.totalorder %s22, 0
      %p64 = por %p62, %p63
      %p65 = scmp.ne.s32.totalorder %s51, %s52
      %p66 = scmp.eq.s32.totalorder %s23, 7
      %p67 = por %p65, %p66
      %p69 = scmp.ne.s32.totalorder %s52, %s68
      %p70 = scmp.eq.s32.totalorder %s23, 0
      %p71 = por %p69, %p70
      %s73 = sadd.s32 %s72, 1
      %p76 = scmp.eq.s32.totalorder %s17, 7
      %p77 = scmp.ne.s32.totalorder %s72, %s74
      %p78 = scmp.eq.s32.totalorder %s17, 0
      %p79 = por %p77, %p78
      %p80 = scmp.ne.s32.totalorder %s72, %s74
      %p81 = scmp.eq.s32.totalorder %s22, 7
      %p82 = por %p80, %p81
      %p83 = scmp.ne.s32.totalorder %s74, %s75
      %p84 = scmp.eq.s32.totalorder %s22, 0
      %p85 = por %p83, %p84
      %p86 = scmp.ne.s32.totalorder %s74, %s75
      %p87 = scmp.eq.s32.totalorder %s23, 7
      %p88 = por %p86, %p87
      %p90 = scmp.ne.s32.totalorder %s75, %s89
      %p91 = scmp.eq.s32.totalorder %s23, 0
      %p92 = por %p90, %p91
      %s94 = sadd.s32 %s93, 1
      %p97 = scmp.eq.s32.totalorder %s17, 7
      %p98 = scmp.ne.s32.totalorder %s93, %s95
      %p99 = scmp.eq.s32.totalorder %s17, 0
      %p100 = por %p98, %p99
      %p101 = scmp.ne.s32.totalorder %s93, %s95
      %p102 = scmp.eq.s32.totalorder %s22, 7
      %p103 = por %p101, %p102
      %p104 = scmp.ne.s32.totalorder %s95, %s96
      %p105 = scmp.eq.s32.totalorder %s22, 0
      %p106 = por %p104, %p105
      %p107 = scmp.ne.s32.totalorder %s95, %s96
      %p108 = scmp.eq.s32.totalorder %s23, 7
      %p109 = por %p107, %p108
      %p111 = scmp.ne.s32.totalorder %s96, %s110
      %p112 = scmp.eq.s32.totalorder %s23, 0
      %p113 = por %p111, %p112
      %s115 = sadd.s32 %s114, 1
      %p118 = scmp.eq.s32.totalorder %s17, 7
      %p119 = scmp.ne.s32.totalorder %s114, %s116
      %p120 = scmp.eq.s32.totalorder %s17, 0
      %p121 = por %p119, %p120
      %p122 = scmp.ne.s32.totalorder %s114, %s116
      %p123 = scmp.eq.s32.totalorder %s22, 7
      %p124 = por %p122, %p123
      %p125 = scmp.ne.s32.totalorder %s116, %s117
      %p126 = scmp.eq.s32.totalorder %s22, 0
      %p127 = por %p125, %p126
      %p128 = scmp.ne.s32.totalorder %s116, %s117
      %p129 = scmp.eq.s32.totalorder %s23, 7
      %p130 = por %p128, %p129
      %p132 = scmp.ne.s32.totalorder %s117, %s131
      %p133 = scmp.eq.s32.totalorder %s23, 0
      %p134 = por %p132, %p133
      %s135 = smul.u32 %s24, %s25
      %s136 = smul.u32 %s43, %s39
      %s137 = ssub.s32 %s135, %s136
      %p138 = scmp.eq.s32.totalorder %s137, 0
      %s140 = sadd.s32 %s139, 1
      %s141 = scalar_select %p138, %s139, %s140
      %p144 = pneg %p138
      %p145 = scmp.eq.s32.totalorder %s17, 7
      %p146 = por %p144, %p145
      %p147 = scmp.ne.s32.totalorder %s139, %s142
      %p148 = scmp.eq.s32.totalorder %s17, 0
      %p149 = por %p147, %p148
      %p150 = scmp.ne.s32.totalorder %s139, %s142
      %p151 = scmp.eq.s32.totalorder %s22, 7
      %p152 = por %p150, %p151
      %p153 = scmp.ne.s32.totalorder %s142, %s143
      %p154 = scmp.eq.s32.totalorder %s22, 0
      %p155 = por %p153, %p154
      %p156 = scmp.ne.s32.totalorder %s142, %s143
      %p157 = scmp.eq.s32.totalorder %s23, 7
      %p158 = por %p156, %p157
      %p160 = scmp.ne.s32.totalorder %s143, %s159
      %p161 = scmp.eq.s32.totalorder %s23, 0
      %p162 = por %p160, %p161
      %p163 = scmp.le.s32.totalorder 1, %s17
      %p164 = scmp.lt.s32.totalorder %s17, 9
      %p165 = pnand %p163, %p164
      %p166 = pneg %p165
      // Predicated region
      $region9: #{tpu_custom_call.1} parent=5 // pred_check
        _
      $region10: #{tpu_custom_call.1} parent=5 // pred_check_branch
        %168 = sbr.rel (%p165) target = $region12
      $region11: #{tpu_custom_call.1} parent=5 // pred_region
        %s169 = ssub.s32 %s17, 1
        // Predicated region
        $region13: #{tpu_custom_call.1} parent=11 // pred_check
          %p170 = pneg %p85
        $region14: #{tpu_custom_call.1} parent=11 // pred_check_branch
          %172 = sbr.rel (%p170) target = $region16
        $region15: #{tpu_custom_call.1} parent=11 // pred_region
          %s174 = ssub.s32 2048, 2048
          %175 = vsyncadd [#allocation8], %s174
          %s176 = sshll.u32 [#allocation7], 4
          %s177 = int_to_ptr.vmem [resolvable:$true] %s176
          %182 = dma.hbm_to_vmem [thread:$0]  %s1, 2048, %s177, [#allocation8], 128, 128, 8
        $region16: #{tpu_custom_call.1} parent=11 // pred_fallthru
          _
        // Predicated region
        $region17: #{tpu_custom_call.1} parent=11 // pred_check
          %p183 = pneg %p106
        $region18: #{tpu_custom_call.1} parent=11 // pred_check_branch
          %185 = sbr.rel (%p183) target = $region20
        $region19: #{tpu_custom_call.1} parent=11 // pred_region
          _
        $region20: #{tpu_custom_call.1} parent=11 // pred_fallthru
          _
        // Predicated region
        $region21: #{tpu_custom_call.1} parent=11 // pred_check
          %p186 = pneg %p127
        $region22: #{tpu_custom_call.1} parent=11 // pred_check_branch
          %188 = sbr.rel (%p186) target = $region24
        $region23: #{tpu_custom_call.1} parent=11 // pred_region
          _
        $region24: #{tpu_custom_call.1} parent=11 // pred_fallthru
          _
      $region12: #{tpu_custom_call.1} parent=5 // pred_fallthru
        _
      %p189 = scmp.lt.s32.totalorder %s17, 8
      // Predicated region
      $region25: #{tpu_custom_call.1} parent=5 // pred_check
        %p190 = pneg %p189
      $region26: #{tpu_custom_call.1} parent=5 // pred_check_branch
        %192 = sbr.rel (%p190) target = $region28
      $region27: #{tpu_custom_call.1} parent=5 // pred_region
        // Predicated region
        $region29: #{tpu_custom_call.1} parent=27 // pred_check
          %p193 = pneg %p58
        $region30: #{tpu_custom_call.1} parent=27 // pred_check_branch
          %195 = sbr.rel (%p193) target = $region32
        $region31: #{tpu_custom_call.1} parent=27 // pred_region
          %s196 = sand.u32 %s48, 1
          %s197 = scalar_lea.sflag [#allocation5], %s196
          %s198 = sand.u32 %s48, 1
          %s199 = smul.addr %s198, 8
          %s200 = scalar_lea.vmem [#allocation4], %s199
          %s201 = sadd.s32 %s26, %s25
          %s203 = ssub.s32 128, 128
          %204 = vsyncadd %s197, %s203
          %s205 = smul.addr %s201, 128
          %s206 = scalar_lea.hbm %s0, %s205
          %s208 = sshll.u32 %s200, 4
          %s209 = int_to_ptr.vmem [resolvable:$true] %s208
          %211 = dma.hbm_to_vmem [thread:$0]  %s206, 128, %s209, %s197
        $region32: #{tpu_custom_call.1} parent=27 // pred_fallthru
          _
      $region28: #{tpu_custom_call.1} parent=5 // pred_fallthru
        _
      %p212 = scmp.le.s32.totalorder 1, %s17
      %p213 = scmp.lt.s32.totalorder %s17, 9
      %p214 = pnand %p212, %p213
      %p215 = pneg %p214
      // Predicated region
      $region33: #{tpu_custom_call.1} parent=5 // pred_check
        _
      $region34: #{tpu_custom_call.1} parent=5 // pred_check_branch
        %217 = sbr.rel (%p214) target = $region36
      $region35: #{tpu_custom_call.1} parent=5 // pred_region
        %s218 = ssub.s32 %s17, 1
        %s219 = sand.u32 %s51, 1
        %s220 = scalar_lea.sflag [#allocation5], %s219
        %s221 = sand.u32 %s51, 1
        %s222 = smul.addr %s221, 8
        %s223 = scalar_lea.vmem [#allocation4], %s222
        // Predicated region
        $region37: #{tpu_custom_call.1} parent=35 // pred_check
          %p224 = pneg %p64
        $region38: #{tpu_custom_call.1} parent=35 // pred_check_branch
          %226 = sbr.rel (%p224) target = $region40
        $region39: #{tpu_custom_call.1} parent=35 // pred_region
          %227 = dma.done %s220, 128
        $region40: #{tpu_custom_call.1} parent=35 // pred_fallthru
          _
        // Predicated region
        $region41: #{tpu_custom_call.1} parent=35 // pred_check
          %p228 = pneg %p85
        $region42: #{tpu_custom_call.1} parent=35 // pred_check_branch
          %230 = sbr.rel (%p228) target = $region44
        $region43: #{tpu_custom_call.1} parent=35 // pred_region
          %231 = dma.done [#allocation8], 2048
        $region44: #{tpu_custom_call.1} parent=35 // pred_fallthru
          _
        %s232 = sand.u32 %s51, 1
        %s233 = scalar_lea.sflag [#allocation5], %s232
        %s234 = sand.u32 %s51, 1
        %s235 = smul.addr %s234, 8
        %s236 = scalar_lea.vmem [#allocation4], %s235
        %p237 = pneg %p64
        %p238 = pneg %p61
        %p239 = pneg %p85
        %p240 = pneg %p82
        %p241 = pneg %p106
        %p242 = pneg %p103
        %p243 = pneg %p127
        %p244 = pneg %p124
        %p245 = pneg %p155
        %p246 = pneg %p152
        %s247 = sand.u32 %s142, 1
        %s248 = scalar_lea.sflag [#allocation6], %s247
        %s249 = sand.u32 %s142, 1
        %s250 = smul.addr %s249, 8
        %s251 = scalar_lea.vmem [#allocation9], %s250
        %s252 = sadd.s32 %s29, %s28
        %s253 = smul.u32 %s27, %s28
        %v254 = vlaneseq
        %v255 = vand.u32 %v254, 127
        %v256 = vstv %s29
        %vm257 = vcmp.eq.s32.totalorder %v255, %v256
        %v258 = vsel %vm257, 1.0, 0.0
        %p259 = scmp.eq.s32.totalorder %s27, 0
        %p260 = scmp.eq.s32.totalorder %s28, 0
        %p261 = pnand %p259, %p260
        %p262 = pneg %p261
        %p263 = scmp.eq.s32.totalorder %s29, 0
        %p264 = pnand %p262, %p263
        %p265 = pneg %p264
        // Predicated region
        $region45: #{tpu_custom_call.1} parent=35 // pred_check
          _
        $region46: #{tpu_custom_call.1} parent=35 // pred_check_branch
          %267 = sbr.rel (%p264) target = $region48
        $region47: #{tpu_custom_call.1} parent=35 // pred_region
          %268 = vst [vmem:[#allocation2] sm:$0x1] 0.0
        $region48: #{tpu_custom_call.1} parent=35 // pred_fallthru
          _
        // Predicated region
        $region49: #{tpu_custom_call.1} parent=35 // pred_check
          %p269 = pneg %p259
        $region50: #{tpu_custom_call.1} parent=35 // pred_check_branch
          %271 = sbr.rel (%p269) target = $region52
        $region51: #{tpu_custom_call.1} parent=35 // pred_region
          %v272 = vld [vmem:[%s223] sm:$0xff]
          %v273 = vld [vmem:[#allocation7] sm:$0xff]
          %v274 = vld [vmem:[#allocation7 + $0x8] sm:$0xff]
          %v275 = vld [vmem:[#allocation7 + $0x10] sm:$0xff]
          %v276 = vld [vmem:[#allocation7 + $0x18] sm:$0xff]
          %v277 = vld [vmem:[#allocation7 + $0x20] sm:$0xff]
          %v278 = vld [vmem:[#allocation7 + $0x28] sm:$0xff]
          %v279 = vld [vmem:[#allocation7 + $0x30] sm:$0xff]
          %v280 = vld [vmem:[#allocation7 + $0x38] sm:$0xff]
          %v281 = vld [vmem:[#allocation7 + $0x40] sm:$0xff]
          %v282 = vld [vmem:[#allocation7 + $0x48] sm:$0xff]
          %v283 = vld [vmem:[#allocation7 + $0x50] sm:$0xff]
          %v284 = vld [vmem:[#allocation7 + $0x58] sm:$0xff]
          %v285 = vld [vmem:[#allocation7 + $0x60] sm:$0xff]
          %v286 = vld [vmem:[#allocation7 + $0x68] sm:$0xff]
          %v287 = vld [vmem:[#allocation7 + $0x70] sm:$0xff]
          %v288 = vld [vmem:[#allocation7 + $0x78] sm:$0xff]
          %v289 = vld [vmem:[%s2] sm:$0x1]
          %v291 = vlaneseq
          %v292 = vshrl.u32 %v291, 7
          %v293 = vsub.s32 0, %v292
          %v294 = vrot.slane %v289, %v293
          %296 = vmatprep.subr.mxu0 0.0
          %297 = vmatpush1.msra.mxu0 %v273
          %298 = vmatprep.subr.mxu0 0.0
          %299 = vmatpush1.msra.mxu0 %v274
          %300 = vmatprep.subr.mxu0 0.0
          %301 = vmatpush1.msra.mxu0 %v275
          %302 = vmatprep.subr.mxu0 0.0
          %303 = vmatpush1.msra.mxu0 %v276
          %304 = vmatprep.subr.mxu0 0.0
          %305 = vmatpush1.msra.mxu0 %v277
          %306 = vmatprep.subr.mxu0 0.0
          %307 = vmatpush1.msra.mxu0 %v278
          %308 = vmatprep.subr.mxu0 0.0
          %309 = vmatpush1.msra.mxu0 %v279
          %310 = vmatprep.subr.mxu0 0.0
          %311 = vmatpush1.msra.mxu0 %v280
          %312 = vmatprep.subr.mxu0 0.0
          %313 = vmatpush1.msra.mxu0 %v281
          %314 = vmatprep.subr.mxu0 0.0
          %315 = vmatpush1.msra.mxu0 %v282
          %316 = vmatprep.subr.mxu0 0.0
          %317 = vmatpush1.msra.mxu0 %v283
          %318 = vmatprep.subr.mxu0 0.0
          %319 = vmatpush1.msra.mxu0 %v284
          %320 = vmatprep.subr.mxu0 0.0
          %321 = vmatpush1.msra.mxu0 %v285
          %322 = vmatprep.subr.mxu0 0.0
          %323 = vmatpush1.msra.mxu0 %v286
          %324 = vmatprep.subr.mxu0 0.0
          %325 = vmatpush1.msra.mxu0 %v287
          %326 = vmatprep.subr.mxu0 0.0
          %327 = vmatpush1.msra.mxu0 %v288
          %328 = vmatprep.subr.mxu0 0.0
          %329 = vmatpush1.msra.mxu0 0.0
          %330 = vmatprep.subr.mxu0 0.0
          %331 = vmatpush1.msra.mxu0 0.0
          %332 = vmatprep.subr.mxu0 0.0
          %333 = vmatpush1.msra.mxu0 0.0
          %334 = vmatprep.subr.mxu0 0.0
          %335 = vmatpush1.msra.mxu0 0.0
          %336 = vmatprep.subr.mxu0 0.0
          %337 = vmatpush1.msra.mxu0 0.0
          %338 = vmatprep.subr.mxu0 0.0
          %339 = vmatpush1.msra.mxu0 0.0
          %340 = vmatprep.subr.mxu0 0.0
          %341 = vmatpush1.msra.mxu0 0.0
          %342 = vmatprep.subr.mxu0 0.0
          %343 = vmatpush1.msra.mxu0 0.0
          %344 = vmatprep.subr.mxu0 0.0
          %345 = vmatpush1.msra.mxu0 0.0
          %346 = vmatprep.subr.mxu0 0.0
          %347 = vmatpush1.msra.mxu0 0.0
          %348 = vmatprep.subr.mxu0 0.0
          %349 = vmatpush1.msra.mxu0 0.0
          %350 = vmatprep.subr.mxu0 0.0
          %351 = vmatpush1.msra.mxu0 0.0
          %352 = vmatprep.subr.mxu0 0.0
          %353 = vmatpush1.msra.mxu0 0.0
          %354 = vmatprep.subr.mxu0 0.0
          %355 = vmatpush1.msra.mxu0 0.0
          %356 = vmatprep.subr.mxu0 0.0
          %357 = vmatpush1.msra.mxu0 0.0
          %358 = vmatprep.subr.mxu0 0.0
          %359 = vmatpush1.msra.mxu0 0.0
          %360 = vmatprep.mubr.f32.mxu0 0.0
          %361 = vmatmul.mubr.f32.gmra.mrb[0].mxu0 %v272
          %v362 = vpop.f32.mrb[0].mxu0
          %v363 = vadd.f32 %v294, %v362
          %v364 = vpop.f32.mrb[0].mxu0
          %365 = vdwg.mxu0
          %v366 = vtanh.pop %v363
          %v367 = vlaneseq
          %v368 = vshrl.u32 %v367, 7
          %s369 = smul.u32 %s28, 8
          %v370 = vstv %s369
          %v371 = vadd.s32 %v368, %v370
          %vm372 = vcmp.lt.s32.totalorder %v371, 8
          %v373 = vsel %vm372, %v366, 0.0
          %v374 = vrot.slane %v373, 4
          %v375 = vadd.f32 %v373, %v374
          %v376 = vrot.slane %v375, 2
          %v377 = vadd.f32 %v375, %v376
          %v378 = vrot.slane %v377, 1
          %v379 = vadd.f32 %v377, %v378
          %v380 = vld [vmem:[%s3] sm:$0x1]
          %v381 = vmul.f32 %v379, %v380
          %vm382 = vcmask 1040384
          %v383 = vsel %vm382, %v381, 0.0
          %384 = vadd.xlane.f32.xlu0 %v383
          %v385 = vpop.xlane.xlu0 %384
          %v386 = vld [vmem:[#allocation2] sm:$0x1]
          %v387 = vmul.f32 %v385, %v258
          %v388 = vadd.f32 %v386, %v387
          %389 = vst [vmem:[#allocation2] sm:$0x1] %v388
        $region52: #{tpu_custom_call.1} parent=35 // pred_fallthru
          _
        %p390 = scmp.eq.s32.totalorder %s29, 3
        %p391 = pnand %p262, %p390
        %p392 = pneg %p391
        // Predicated region
        $region53: #{tpu_custom_call.1} parent=35 // pred_check
          _
        $region54: #{tpu_custom_call.1} parent=35 // pred_check_branch
          %394 = sbr.rel (%p391) target = $region56
        $region55: #{tpu_custom_call.1} parent=35 // pred_region
          %v395 = vld [vmem:[#allocation2] sm:$0x1]
          %v396 = vmul.f32 %v395, 0.125
          %vm397 = vcmp.lt.s32.totalorder %v255, 4
          %v398 = vsel %vm397, %v396, -inf
          %vm399 = vcmask 1040384
          %v400 = vsel %vm399, %v398, -inf
          %401 = vmax.xlane.f32.xlu0 %v400
          %v402 = vpop.xlane.xlu0 %401
          %v403 = vsub.f32 %v398, %v402
          %v404 = vmul.f32 %v403, 1.442695
          %v405 = vpow.pop %v404
          %v406 = vsel %vm397, %v405, 0.0
          %v407 = vsel %vm399, %v406, 0.0
          %408 = vadd.xlane.f32.xlu0 %v407
          %v409 = vpop.xlane.xlu0 %408
          %v410 = vrcp.pop %v409
          %v411 = vmul.f32 %v406, %v410
          %412 = vst [vmem:[#allocation2] sm:$0x1] %v411
        $region56: #{tpu_custom_call.1} parent=35 // pred_fallthru
          _
        %p413 = scmp.eq.s32.totalorder %s27, 1
        %p414 = pnand %p413, %p263
        %p415 = pneg %p414
        // Predicated region
        $region57: #{tpu_custom_call.1} parent=35 // pred_check
          _
        $region58: #{tpu_custom_call.1} parent=35 // pred_check_branch
          %417 = sbr.rel (%p414) target = $region60
        $region59: #{tpu_custom_call.1} parent=35 // pred_region
          %418 = vst [vmem:[#allocation3] sm:$0xff] 0.0
        $region60: #{tpu_custom_call.1} parent=35 // pred_fallthru
          _
        // Predicated region
        $region61: #{tpu_custom_call.1} parent=35 // pred_check
          %p419 = pneg %p413
        $region62: #{tpu_custom_call.1} parent=35 // pred_check_branch
          %421 = sbr.rel (%p419) target = $region64
        $region63: #{tpu_custom_call.1} parent=35 // pred_region
          %v422 = vld [vmem:[#allocation2] sm:$0x1]
          %v423 = vmul.f32 %v422, %v258
          %vm424 = vcmask 1040384
          %v425 = vsel %vm424, %v423, 0.0
          %426 = vadd.xlane.f32.xlu0 %v425
          %v427 = vpop.xlane.xlu0 %426
          %v428 = vld [vmem:[#allocation3] sm:$0xff]
          %v429 = vld [vmem:[%s223] sm:$0xff]
          %v430 = vlaneseq
          %v431 = vshrl.u32 %v430, 7
          %v432 = vsub.s32 0, %v431
          %v433 = vrot.slane %v427, %v432
          %v434 = vmul.f32 %v433, %v429
          %v435 = vadd.f32 %v428, %v434
          %436 = vst [vmem:[#allocation3] sm:$0xff] %v435
        $region64: #{tpu_custom_call.1} parent=35 // pred_fallthru
          _
        %p437 = pnand %p413, %p390
        %p438 = pneg %p437
        // Predicated region
        $region65: #{tpu_custom_call.1} parent=35 // pred_check
          _
        $region66: #{tpu_custom_call.1} parent=35 // pred_check_branch
          %440 = sbr.rel (%p437) target = $region68
        $region67: #{tpu_custom_call.1} parent=35 // pred_region
          %v441 = vld [vmem:[#allocation3] sm:$0xff]
          %442 = vst [vmem:[%s251] sm:$0xff] %v441
        $region68: #{tpu_custom_call.1} parent=35 // pred_fallthru
          _
        %s443 = sand.u32 %s142, 1
        %s444 = scalar_lea.sflag [#allocation6], %s443
        %s445 = sand.u32 %s142, 1
        %s446 = smul.addr %s445, 8
        %s447 = scalar_lea.vmem [#allocation9], %s446
        // Predicated region
        $region69: #{tpu_custom_call.1} parent=35 // pred_check
          %p448 = pneg %p152
        $region70: #{tpu_custom_call.1} parent=35 // pred_check_branch
          %450 = sbr.rel (%p448) target = $region72
        $region71: #{tpu_custom_call.1} parent=35 // pred_region
          %s451 = smul.u32 %s27, %s28
          %s453 = ssub.s32 128, 128
          %454 = vsyncadd %s444, %s453
          %s455 = smul.addr %s451, 128
          %s456 = scalar_lea.hbm %s4, %s455
          %s458 = sshll.u32 %s447, 4
          %s459 = int_to_ptr.vmem [resolvable:$true] %s458
          %461 = dma.vmem_to_hbm [thread:$0]  %s459, 128, %s456, %s444
        $region72: #{tpu_custom_call.1} parent=35 // pred_fallthru
          _
      $region36: #{tpu_custom_call.1} parent=5 // pred_fallthru
        _
      %p462 = scmp.le.s32.totalorder 2, %s17
      // Predicated region
      $region73: #{tpu_custom_call.1} parent=5 // pred_check
        %p463 = pneg %p462
      $region74: #{tpu_custom_call.1} parent=5 // pred_check_branch
        %465 = sbr.rel (%p463) target = $region76
      $region75: #{tpu_custom_call.1} parent=5 // pred_region
        %s466 = ssub.s32 %s17, 2
        // Predicated region
        $region77: #{tpu_custom_call.1} parent=75 // pred_check
          %p467 = pneg %p158
        $region78: #{tpu_custom_call.1} parent=75 // pred_check_branch
          %469 = sbr.rel (%p467) target = $region80
        $region79: #{tpu_custom_call.1} parent=75 // pred_region
          %s470 = sand.u32 %s143, 1
          %s471 = scalar_lea.sflag [#allocation6], %s470
          %s472 = sand.u32 %s143, 1
          %s473 = smul.addr %s472, 8
          %s474 = scalar_lea.vmem [#allocation9], %s473
          %475 = dma.done %s471, 128
        $region80: #{tpu_custom_call.1} parent=75 // pred_fallthru
          _
      $region76: #{tpu_custom_call.1} parent=5 // pred_fallthru
        _
    $region6: #{tpu_custom_call.1} parent=1 // loop_footer
      %s21 = sadd.s32 1, %s17
    $region7: #{tpu_custom_call.1} parent=1 // loop_footer_branch
      %16 = sbr.rel target = $region3
    $region8: #{tpu_custom_call.1} parent=1 // loop_exit
      _
    %476 = vsyncpa [#allocation5], 1
    %s477 = scalar_lea.sflag [#allocation5], 1
    %478 = vsyncpa %s477, 1
    %479 = vsyncpa [#allocation8], 1
    %480 = vsyncpa [#allocation6], 1
    %s481 = scalar_lea.sflag [#allocation6], 1
    %482 = vsyncpa %s481, 1

</llo_original>
